<compile_context>
chip_gen: v6e
topology: v6e:2x2x1
jax: 0.10.0
libtpu: 0.0.40
codegen_flags: <defaults>
</compile_context>

<pallas_src>
import math

import numpy as np

import jax
import jax.numpy as jnp
from jax.experimental import pallas as pl
from jax.experimental.pallas import tpu as pltpu


# ----------------------------- Pallas kernels ------------------------------

def _gemm_bias_kernel(x_ref, w_ref, b_ref, o_ref):
    acc = jnp.dot(x_ref[...], w_ref[...], preferred_element_type=jnp.float32)
    o_ref[...] = (acc + b_ref[...].astype(jnp.float32)).astype(o_ref.dtype)


def _gemm_kernel(x_ref, w_ref, o_ref):
    o_ref[...] = jnp.dot(
        x_ref[...], w_ref[...], preferred_element_type=jnp.float32
    ).astype(o_ref.dtype)


# --------------------------- VMEM budget / tiling ---------------------------

_MIB = 1024 * 1024


def _vmem_budget_bytes():
    """Generation-aware VMEM budget (per TensorCore)."""
    cap = 64 * _MIB                      # safe default: v7x per-TC VMEM
    try:
        cap = int(pltpu.get_tpu_info().vmem_capacity_bytes)
    except Exception:
        pass
    # 75% of capacity, capped: ~48 MiB on v7x (64 MiB/TC), up to 96 MiB on
    # v5e/v6e (128 MiB physical; default scoped limits of 16/32 MiB are
    # overridden via vmem_limit_bytes below).
    return max(16 * _MIB, min(int(0.75 * cap), 96 * _MIB))


def _round_up(x, m):
    return ((x + m - 1) // m) * m


def _tm_candidates(M):
    if M <= 128:
        return [M]                       # full-dim block (always legal)
    return [t for t in (1024, 512, 256, 128) if t <= M]


def _tn_candidates(N):
    if N <= 128:
        return [N]
    return [t for t in (2048, 1024, 512, 256, 128) if t <= N]


def _tile_bytes(tm, tn, K, in_b, w_b, out_b, w_bufs):
    """Concurrent VMEM need for one grid step."""
    x_bytes = 2 * tm * K * in_b          # streamed x tile, double buffered
    w_bytes = w_bufs * K * tn * w_b      # weight tile (1 buffer when resident)
    o_bytes = 2 * tm * tn * out_b        # output tile, double buffered
    acc_bytes = tm * tn * 4              # f32 (acc + bias) before cast/store
    b_bytes = 2 * tn * out_b             # bias tile (tiny)
    return x_bytes + w_bytes + o_bytes + acc_bytes + b_bytes


def _plan_tiles(M, K, N, in_b, w_b, out_b, budget, allow_single_buffer):
    """Pick (tm, tn, single_buffer_w): prefer whole-weight VMEM residency
    (single-buffered), then N tiling; tm/tn are MXU-aligned (128 multiples)."""
    plan_budget = int(0.85 * budget)     # headroom for compiler scratch / sems
    tm_c = _tm_candidates(M)
    tn_c = _tn_candidates(N)

    # Pass A: whole weight resident as a single (K, N) block.
    wbufs_a = 1 if allow_single_buffer else 2
    for min_tm in (256, 0):
        for tm in tm_c:
            if (tm >= min_tm or tm == M) and \
                    _tile_bytes(tm, N, K, in_b, w_b, out_b, wbufs_a) <= plan_budget:
                return tm, N, allow_single_buffer

    # Pass B: tile the weight over N (streamed -> default double buffering).
    for min_tm in (256, 0):
        for tn in tn_c:
            for tm in tm_c:
                if (tm >= min_tm or tm == M) and \
                        _tile_bytes(tm, tn, K, in_b, w_b, out_b, 2) <= plan_budget:
                    return tm, tn, False

    # Last resort: smallest tiles; the caller raises vmem_limit_bytes to match.
    # TODO(synk): for K so large that even a (128, K) x slab busts VMEM, add a
    # K grid axis with an f32 accumulator scratch instead of a bigger limit.
    return tm_c[-1], tn_c[-1], False


# ------------------------------ fused GEMM call ------------------------------

def _pallas_linear_impl(x2, w, bias2, out_dtype, allow_single_buffer):
    M, K = x2.shape
    K2, N = w.shape
    assert K == K2

    in_b = x2.dtype.itemsize
    w_b = w.dtype.itemsize
    out_b = jnp.dtype(out_dtype).itemsize

    budget = _vmem_budget_bytes()
    tm, tn, single_w = _plan_tiles(M, K, N, in_b, w_b, out_b, budget,
                                   allow_single_buffer)

    # v7x megacore balance: a single grid point leaves one TensorCore idle;
    # split the batch when it is big enough to be worth two tiles.
    if pl.cdiv(M, tm) * pl.cdiv(N, tn) == 1 and M >= 512:
        tm = _round_up(pl.cdiv(M, 2), 128)

    need = _tile_bytes(tm, tn, K, in_b, w_b, out_b, 1 if single_w else 2)
    vmem_limit = max(budget, min(int(need * 1.15) + 2 * _MIB, 128 * _MIB))

    # Grid order: N tiles outer, M tiles inner -> each weight column tile is
    # DMA'd from HBM exactly once per call; x/out stream over the batch.
    grid = (pl.cdiv(N, tn), pl.cdiv(M, tm))

    const_kwargs = {}
    if single_w:
        # Weight/bias block index is constant over the grid -> keep one
        # VMEM-resident copy instead of the default 2 pipeline buffers.
        const_kwargs = dict(pipeline_mode=pl.Buffered(buffer_count=1))

    in_specs = [
        pl.BlockSpec((tm, K), lambda j, i: (i, 0)),               # x: streams over M
        pl.BlockSpec((K, tn), lambda j, i: (0, j), **const_kwargs),  # W_eff column tile
    ]
    args = [x2, w]
    if bias2 is not None:
        in_specs.append(pl.BlockSpec((1, tn), lambda j, i: (0, j), **const_kwargs))
        args.append(bias2)
        kernel = _gemm_bias_kernel
    else:
        kernel = _gemm_kernel

    return pl.pallas_call(
        kernel,
        out_shape=jax.ShapeDtypeStruct((M, N), out_dtype),
        grid=grid,
        in_specs=in_specs,
        out_specs=pl.BlockSpec((tm, tn), lambda j, i: (i, j)),    # lane-dense output
        compiler_params=pltpu.CompilerParams(
            dimension_semantics=("parallel", "parallel"),
            vmem_limit_bytes=int(vmem_limit),
        ),
    )(*args)


def pallas_linear(x2, w, bias=None, *, out_dtype=None):
    """Fused (M, K) @ (K, N) [+ bias] with N/M tiling and f32 MXU accumulation."""
    out_dtype = out_dtype if out_dtype is not None else x2.dtype
    bias2 = None if bias is None else bias.reshape(1, w.shape[1])
    try:
        return _pallas_linear_impl(x2, w, bias2, out_dtype, True)
    except Exception:
        # pl.Buffered(1) (single-buffered resident weight) not supported by this
        # jax build -- re-plan with default double buffering (still correct).
        return _pallas_linear_impl(x2, w, bias2, out_dtype, False)


# ----------------------------- GetSubnet (glue) -----------------------------

def get_subnet_mask(abs_scores, k):
    """Replicates GetSubnet.forward: bottom (1-k) fraction -> 0, rest -> 1."""
    # TODO(synk): sort-based top-k mask over the tiny popup_scores has no
    # efficient Pallas equivalent; kept in plain JAX (parameter-setup glue).
    flat = abs_scores.flatten()
    n = flat.shape[0]
    j = int((1.0 - k) * n)
    idx = jnp.argsort(flat)
    out = jnp.ones((n,), abs_scores.dtype)
    out = out.at[idx[:j]].set(0.0)
    return out.reshape(abs_scores.shape)


# ----------------------- effective weight (setup glue) ----------------------

def _effective_weight(A_ref, B_ref, iA, iB, oA, oB):
    """Direct construction of the (iA*iB, oA*oB) effective weight.

    The reference pipeline is: view(iA,iB) @ B -> raw view(oB,iA) -> @ A ->
    flatten.  Writing the intermediate flat index m = a*oB + q = p*iA + a2,
    every m contributes the rank-1 block  B[:, q] (outer) A[a2, :]  to the
    weight block (rows a*iB+b, cols p*oA+c).  Indices are static, so this is
    one gather + one scatter-add: O(K*N) memory/FLOPs, no eye(K).
    """
    K, N = iA * iB, oA * oB
    m = np.arange(iA * oB)
    a_m = m // oB            # row block of the contribution
    q_m = m % oB             # column of B used
    p_m = m // iA            # column block of the contribution
    a2_m = m % iA            # row of A used

    b_sel = B_ref.T[q_m]                                  # (iA*oB, iB)
    a_sel = A_ref[a2_m]                                   # (iA*oB, oA)
    contrib = b_sel[:, :, None] * a_sel[:, None, :]       # (iA*oB, iB, oA)

    dtype = jnp.result_type(A_ref.dtype, B_ref.dtype)
    w4 = jnp.zeros((iA, iB, oB, oA), dtype=dtype)
    w4 = w4.at[a_m, :, p_m, :].add(contrib.astype(dtype))
    return w4.reshape(K, N)


# ----------------------------- forward wrapper ------------------------------

def linear_arlst_forward(x, A, B, popup_scores_A, popup_scores_B, bias, k,
                         input_dim_A, input_dim_B, output_dim_A, output_dim_B,
                         use_bias=True):
    input_dim = input_dim_A * input_dim_B
    output_dim = output_dim_A * output_dim_B
    assert x.shape[-1] == input_dim

    adj_A = get_subnet_mask(jnp.abs(popup_scores_A), k)
    adj_B = get_subnet_mask(jnp.abs(popup_scores_B), k)
    A_ref = A * adj_A        # (input_dim_A, output_dim_A)
    B_ref = B * adj_B        # (input_dim_B, output_dim_B)

    # Collapse both skinny-K matmuls + the raw view reinterpretation into one
    # dense weight so the Pallas GEMM contracts over the full input_dim
    # (MXU-friendly) and emits a lane-dense (L, output_dim) output.
    # TODO(synk): for small-batch calls with large factor dims (iA,iB >~ 128) a
    # factored fused kernel that keeps A/B resident would cut weight HBM
    # traffic further; not implemented here.
    w_eff = _effective_weight(A_ref, B_ref, input_dim_A, input_dim_B,
                              output_dim_A, output_dim_B).astype(x.dtype)

    lead_shape = x.shape[:-1]
    L = int(math.prod(lead_shape)) if lead_shape else 1
    x2 = x.reshape(L, input_dim)

    y = pallas_linear(x2, w_eff, bias if use_bias else None, out_dtype=x.dtype)

    out = y.reshape(lead_shape + (output_dim,))
    return out, A_ref, B_ref


# ----------------------------- reference (pure JAX) -------------------------

def linear_arlst_reference(x, A, B, popup_scores_A, popup_scores_B, bias, k,
                           iA, iB, oA, oB, use_bias=True):
    adj_A = get_subnet_mask(jnp.abs(popup_scores_A), k)
    adj_B = get_subnet_mask(jnp.abs(popup_scores_B), k)
    A_ref = A * adj_A
    B_ref = B * adj_B
    lead = x.shape[:-1]
    h = x.reshape(lead + (iA, iB)) @ B_ref            # (..., iA, oB)
    h = h.reshape(lead + (oB, iA)) @ A_ref            # raw .view() then (..., oB, oA)
    out = h.reshape(lead + (oB * oA,))
    if use_bias:
        out = out + bias
    return out


# ----------------------------------- main -----------------------------------

if __name__ == "__main__":
    key = jax.random.PRNGKey(0)

    # kaiming_uniform_(a=sqrt(5)) with fan_in = size(1) — deterministic synthetic init.
    def kaiming_uniform(kk, shape, a=math.sqrt(5.0)):
        fan_in = shape[1]
        gain = math.sqrt(2.0 / (1.0 + a * a))
        bound = gain * math.sqrt(3.0 / fan_in)
        return jax.random.uniform(kk, shape, jnp.float32, -bound, bound)

    def run_case(name, case_key, lead_shape, iA, iB, oA, oB, k, use_bias=True):
        input_dim, output_dim = iA * iB, oA * oB
        kx, kA, kB, ksA, ksB, kb = jax.random.split(case_key, 6)
        x = jax.random.normal(kx, lead_shape + (input_dim,), dtype=jnp.float32)
        A = jax.random.normal(kA, (iA, oA), dtype=jnp.float32)
        B = jax.random.normal(kB, (iB, oB), dtype=jnp.float32)
        pA = kaiming_uniform(ksA, (iA, oA))
        pB = kaiming_uniform(ksB, (iB, oB))
        bias = jax.random.normal(kb, (output_dim,), dtype=jnp.float32)

        out, A_ref, B_ref = linear_arlst_forward(
            x, A, B, pA, pB, bias, k, iA, iB, oA, oB, use_bias=use_bias)
        out = jax.block_until_ready(out)

        ref = linear_arlst_reference(
            x, A, B, pA, pB, bias, k, iA, iB, oA, oB, use_bias=use_bias)
        assert out.shape == lead_shape + (output_dim,), name
        assert jnp.allclose(out, ref, atol=1e-3, rtol=1e-3), (
            f"mismatch vs reference: {name}")

    k1, k2, k3, k4 = jax.random.split(key, 4)
    # Small shapes consistent with the module's assertions (input_dim = iA*iB, ...).
    run_case("base", k1, (2, 4), 4, 8, 4, 8, 0.5, use_bias=True)
    run_case("no_bias", k2, (2, 4), 4, 8, 4, 8, 0.5, use_bias=False)
    # Asymmetric factor dims -> exercises the scrambled raw-view path.
    run_case("scrambled_view", k3, (3, 5), 8, 16, 16, 8, 0.25, use_bias=True)
    # Larger batch -> exercises the multi-tile (partial last tile) M grid.
    run_case("multi_tile_batch", k4, (4, 80), 8, 16, 16, 8, 0.5, use_bias=True)

    print("KERNEL_OK")
</pallas_src>

<mosaic_0001>
module attributes {stable_mosaic.version = 11 : i64} {
  func.func @_gemm_bias_kernel(%arg0: i32, %arg1: i32, %arg2: memref<8x32xf32, #tpu.memory_space<vmem>>, %arg3: memref<32x32xf32, #tpu.memory_space<vmem>>, %arg4: memref<1x32xf32, #tpu.memory_space<vmem>>, %arg5: memref<8x32xf32, #tpu.memory_space<vmem>>) attributes {dimension_semantics = [#tpu.dimension_semantics<parallel>, #tpu.dimension_semantics<parallel>], iteration_bounds = array<i64: 1, 1>, scalar_prefetch = 0 : i64, scratch_operands = 0 : i64, tpu.core_type = #tpu.core_type<tc>, window_params = [{transform_indices = @transform_0, window_bounds = array<i64: 8, 32>}, {pipeline_mode = #tpu.pipeline_mode<synchronous>, transform_indices = @transform_1, window_bounds = array<i64: 32, 32>}, {pipeline_mode = #tpu.pipeline_mode<synchronous>, transform_indices = @transform_2, window_bounds = array<i64: 1, 32>}, {transform_indices = @transform_3, window_bounds = array<i64: 8, 32>}]} {
    %c0 = arith.constant 0 : index
    %c0_0 = arith.constant 0 : index
    %0 = vector.load %arg2[%c0, %c0_0] : memref<8x32xf32, #tpu.memory_space<vmem>>, vector<8x32xf32>
    %c0_1 = arith.constant 0 : index
    %c0_2 = arith.constant 0 : index
    %1 = vector.load %arg3[%c0_1, %c0_2] : memref<32x32xf32, #tpu.memory_space<vmem>>, vector<32x32xf32>
    %cst = arith.constant dense<0.000000e+00> : vector<8x32xf32>
    %2 = tpu.matmul %0, %1, %cst {dimension_numbers = #tpu.dot_dimension_numbers<[1], [0], [0], [1], [0, 0, 1, 1], [], []>} : vector<8x32xf32>, vector<32x32xf32>, vector<8x32xf32> -> vector<8x32xf32>
    %c0_3 = arith.constant 0 : index
    %c0_4 = arith.constant 0 : index
    %3 = vector.load %arg4[%c0_3, %c0_4] : memref<1x32xf32, #tpu.memory_space<vmem>>, vector<1x32xf32>
    %4 = vector.broadcast %3 : vector<1x32xf32> to vector<8x32xf32>
    %5 = arith.addf %2, %4 : vector<8x32xf32>
    %c0_5 = arith.constant 0 : index
    %c0_6 = arith.constant 0 : index
    %6 = vector.load %arg5[%c0_5, %c0_6] : memref<8x32xf32, #tpu.memory_space<vmem>>, vector<8x32xf32>
    tpu.vector_store %arg5[%c0_5, %c0_6], %5 {strides = array<i32>} : memref<8x32xf32, #tpu.memory_space<vmem>>, vector<8x32xf32>,
    return
  }
  func.func @transform_0(%arg0: i32, %arg1: i32) -> (i32, i32) {
    %c0_i32 = arith.constant 0 : i32
    %c0_i32_0 = arith.constant 0 : i32
    return %arg1, %c0_i32 : i32, i32
  }
  func.func @transform_1(%arg0: i32, %arg1: i32) -> (i32, i32) {
    %c0_i32 = arith.constant 0 : i32
    %c0_i32_0 = arith.constant 0 : i32
    return %c0_i32, %arg0 : i32, i32
  }
  func.func @transform_2(%arg0: i32, %arg1: i32) -> (i32, i32) {
    %c0_i32 = arith.constant 0 : i32
    %c0_i32_0 = arith.constant 0 : i32
    return %c0_i32, %arg0 : i32, i32
  }
  func.func @transform_3(%arg0: i32, %arg1: i32) -> (i32, i32) {
    %c0_i32 = arith.constant 0 : i32
    return %arg1, %arg0 : i32, i32
  }
}

module attributes {stable_mosaic.version = 11 : i64} {
  func.func @_gemm_bias_kernel(%arg0: i32, %arg1: i32, %arg2: memref<8x32xf32, #tpu.memory_space<vmem>>, %arg3: memref<32x32xf32, #tpu.memory_space<vmem>>, %arg4: memref<1x32xf32, #tpu.memory_space<vmem>>, %arg5: memref<8x32xf32, #tpu.memory_space<vmem>>) attributes {dimension_semantics = [#tpu.dimension_semantics<parallel>, #tpu.dimension_semantics<parallel>], iteration_bounds = array<i64: 1, 1>, scalar_prefetch = 0 : i64, scratch_operands = 0 : i64, tpu.core_type = #tpu.core_type<tc>, window_params = [{transform_indices = @transform_0, window_bounds = array<i64: 8, 32>}, {transform_indices = @transform_1, window_bounds = array<i64: 32, 32>}, {transform_indices = @transform_2, window_bounds = array<i64: 1, 32>}, {transform_indices = @transform_3, window_bounds = array<i64: 8, 32>}]} {
    %c0 = arith.constant 0 : index
    %c0_0 = arith.constant 0 : index
    %0 = vector.load %arg2[%c0, %c0_0] : memref<8x32xf32, #tpu.memory_space<vmem>>, vector<8x32xf32>
    %c0_1 = arith.constant 0 : index
    %c0_2 = arith.constant 0 : index
    %1 = vector.load %arg3[%c0_1, %c0_2] : memref<32x32xf32, #tpu.memory_space<vmem>>, vector<32x32xf32>
    %cst = arith.constant dense<0.000000e+00> : vector<8x32xf32>
    %2 = tpu.matmul %0, %1, %cst {dimension_numbers = #tpu.dot_dimension_numbers<[1], [0], [0], [1], [0, 0, 1, 1], [], []>} : vector<8x32xf32>, vector<32x32xf32>, vector<8x32xf32> -> vector<8x32xf32>
    %c0_3 = arith.constant 0 : index
    %c0_4 = arith.constant 0 : index
    %3 = vector.load %arg4[%c0_3, %c0_4] : memref<1x32xf32, #tpu.memory_space<vmem>>, vector<1x32xf32>
    %4 = vector.broadcast %3 : vector<1x32xf32> to vector<8x32xf32>
    %5 = arith.addf %2, %4 : vector<8x32xf32>
    %c0_5 = arith.constant 0 : index
    %c0_6 = arith.constant 0 : index
    %6 = vector.load %arg5[%c0_5, %c0_6] : memref<8x32xf32, #tpu.memory_space<vmem>>, vector<8x32xf32>
    tpu.vector_store %arg5[%c0_5, %c0_6], %5 {strides = array<i32>} : memref<8x32xf32, #tpu.memory_space<vmem>>, vector<8x32xf32>,
    return
  }
  func.func @transform_0(%arg0: i32, %arg1: i32) -> (i32, i32) {
    %c0_i32 = arith.constant 0 : i32
    %c0_i32_0 = arith.constant 0 : i32
    return %arg1, %c0_i32 : i32, i32
  }
  func.func @transform_1(%arg0: i32, %arg1: i32) -> (i32, i32) {
    %c0_i32 = arith.constant 0 : i32
    %c0_i32_0 = arith.constant 0 : i32
    return %c0_i32, %arg0 : i32, i32
  }
  func.func @transform_2(%arg0: i32, %arg1: i32) -> (i32, i32) {
    %c0_i32 = arith.constant 0 : i32
    %c0_i32_0 = arith.constant 0 : i32
    return %c0_i32, %arg0 : i32, i32
  }
  func.func @transform_3(%arg0: i32, %arg1: i32) -> (i32, i32) {
    %c0_i32 = arith.constant 0 : i32
    return %arg1, %arg0 : i32, i32
  }
}

</mosaic_0001>

<llo_original>
// kernel: tpu_custom_call.1
$region0: #{tpu_custom_call.1}
  #allocation0 [shape = 'u32[]', space=smem, size = 0x4, offset = 0x4, fixed_abs, tag = 'smem constant byte address 0x4 - core index']
  #allocation1 [shape = 'u32[144,128]{1,0:T(1,128)}', space=vmem, size = 0x12000, scoped, tag = 'internal scratch']
  %s0 = inlined_call_operand.hbm [shape: f32[8,32], index: 0, kind: input, shape index: {}]
  %s1 = inlined_call_operand.hbm [shape: f32[32,32], index: 1, kind: input, shape index: {}]
  %s2 = inlined_call_operand.vmem [shape: f32[1,32], index: 2, kind: input, shape index: {}]
  %s3 = inlined_call_operand.hbm [shape: f32[8,32], index: 3, kind: output, shape index: {}]
  %s4 = sld [smem:[#allocation0]]
  $region30: #{tpu_custom_call.1} parent=0
    _
  %s6 = ssub.s32 1, %s4
  %s7 = scalar_select 0, %s6, %s4
  $region1: #{tpu_custom_call.1} parent=0
    #allocation2 [shape = 'u8[4096]{0}', space=vmem, size = 0x1000, scoped, tag = 'input window, operand 0, single buffered']
    #allocation3 [shape = 's32[1]{0}', space=sflag, size = 0x4, scoped, tag = 'scoped memory for tpu_custom_call.1']
    #allocation4 [shape = 's32[1]{0}', space=sflag, size = 0x4, scoped, tag = 'scoped memory for tpu_custom_call.1']
    #allocation5 [shape = 'u8[16384]{0}', space=vmem, size = 0x4000, scoped, tag = 'input window, operand 1, single buffered']
    #allocation6 [shape = 's32[1]{0}', space=sflag, size = 0x4, scoped, tag = 'scoped memory for tpu_custom_call.1']
    #allocation7 [shape = 'u8[4096]{0}', space=vmem, size = 0x1000, scoped, tag = 'output window, operand 0, single buffered']
    %8 = vsyncpa [#allocation3], 0
    %9 = vsyncpa [#allocation6], 0
    %10 = vsyncpa [#allocation4], 0
    // Predicated region
    $region2: #{tpu_custom_call.1} parent=1 // pred_check
      _
    $region3: #{tpu_custom_call.1} parent=1 // pred_check_branch
      %12 = sbr.rel (0) target = $region5
    $region4: #{tpu_custom_call.1} parent=1 // pred_region
      %s14 = ssub.s32 128, 128
      %15 = vsyncadd [#allocation3], %s14
      %s17 = sshll.u32 [#allocation2], 4
      %s18 = int_to_ptr.vmem [resolvable:$true] %s17
      %20 = dma.hbm_to_vmem [thread:$0]  %s0, 128, %s18, [#allocation3]
    $region5: #{tpu_custom_call.1} parent=1 // pred_fallthru
      _
    // Predicated region
    $region6: #{tpu_custom_call.1} parent=1 // pred_check
      _
    $region7: #{tpu_custom_call.1} parent=1 // pred_check_branch
      %22 = sbr.rel (0) target = $region9
    $region8: #{tpu_custom_call.1} parent=1 // pred_region
      %s24 = ssub.s32 512, 512
      %25 = vsyncadd [#allocation6], %s24
      %s26 = sshll.u32 [#allocation5], 4
      %s27 = int_to_ptr.vmem [resolvable:$true] %s26
      %32 = dma.hbm_to_vmem [thread:$0]  %s1, 512, %s27, [#allocation6], 128, 128, 8
    $region9: #{tpu_custom_call.1} parent=1 // pred_fallthru
      _
    // Predicated region
    $region10: #{tpu_custom_call.1} parent=1 // pred_check
      _
    $region11: #{tpu_custom_call.1} parent=1 // pred_check_branch
      %34 = sbr.rel (0) target = $region13
    $region12: #{tpu_custom_call.1} parent=1 // pred_region
      _
    $region13: #{tpu_custom_call.1} parent=1 // pred_fallthru
      _
    // Predicated region
    $region14: #{tpu_custom_call.1} parent=1 // pred_check
      _
    $region15: #{tpu_custom_call.1} parent=1 // pred_check_branch
      %36 = sbr.rel (0) target = $region17
    $region16: #{tpu_custom_call.1} parent=1 // pred_region
      %37 = dma.done [#allocation3], 128
    $region17: #{tpu_custom_call.1} parent=1 // pred_fallthru
      _
    // Predicated region
    $region18: #{tpu_custom_call.1} parent=1 // pred_check
      _
    $region19: #{tpu_custom_call.1} parent=1 // pred_check_branch
      %39 = sbr.rel (0) target = $region21
    $region20: #{tpu_custom_call.1} parent=1 // pred_region
      %40 = dma.done [#allocation6], 512
    $region21: #{tpu_custom_call.1} parent=1 // pred_fallthru
      _
    %v41 = vld [vmem:[#allocation2] sm:$0xff]
    %v42 = vld [vmem:[#allocation5] sm:$0xff]
    %v43 = vld [vmem:[#allocation5 + $0x8] sm:$0xff]
    %v44 = vld [vmem:[#allocation5 + $0x10] sm:$0xff]
    %v45 = vld [vmem:[#allocation5 + $0x18] sm:$0xff]
    %v46 = vld [vmem:[%s2] sm:$0x1]
    %v48 = vlaneseq
    %v49 = vshrl.u32 %v48, 7
    %v50 = vsub.s32 0, %v49
    %v51 = vrot.slane %v46, %v50
    %vm53 = vcmask 261120
    %v55 = vsel %vm53, %v41, 0
    %57 = vmatprep.subr.mxu0 0.0
    %58 = vmatpush1.msra.mxu0 0.0
    %59 = vmatprep.subr.mxu0 0.0
    %60 = vmatpush1.msra.mxu0 0.0
    %61 = vmatprep.subr.mxu0 0.0
    %62 = vmatpush1.msra.mxu0 0.0
    %63 = vmatprep.subr.mxu0 0.0
    %64 = vmatpush1.msra.mxu0 0.0
    %65 = vmatprep.subr.mxu0 0.0
    %66 = vmatpush1.msra.mxu0 0.0
    %67 = vmatprep.subr.mxu0 0.0
    %68 = vmatpush1.msra.mxu0 0.0
    %69 = vmatprep.subr.mxu0 0.0
    %70 = vmatpush1.msra.mxu0 0.0
    %71 = vmatprep.subr.mxu0 0.0
    %72 = vmatpush1.msra.mxu0 0.0
    %73 = vmatprep.subr.mxu0 0.0
    %74 = vmatpush1.msra.mxu0 0.0
    %75 = vmatprep.subr.mxu0 0.0
    %76 = vmatpush1.msra.mxu0 0.0
    %77 = vmatprep.subr.mxu0 0.0
    %78 = vmatpush1.msra.mxu0 0.0
    %79 = vmatprep.subr.mxu0 0.0
    %80 = vmatpush1.msra.mxu0 0.0
    %81 = vmatprep.subr.mxu0 0.0
    %82 = vmatpush1.msra.mxu0 %v45
    %83 = vmatprep.subr.mxu0 0.0
    %84 = vmatpush1.msra.mxu0 %v44
    %85 = vmatprep.subr.mxu0 0.0
    %86 = vmatpush1.msra.mxu0 %v43
    %87 = vmatprep.subr.mxu0 0.0
    %88 = vmatpush1.msra.mxu0 %v42
    %89 = vmatprep.subr.mxu0 0.0
    %90 = vmatpush2.msra.mxu0 0.0
    %91 = vmatprep.subr.mxu0 0.0
    %92 = vmatpush2.msra.mxu0 0.0
    %93 = vmatprep.subr.mxu0 0.0
    %94 = vmatpush2.msra.mxu0 0.0
    %95 = vmatprep.subr.mxu0 0.0
    %96 = vmatpush2.msra.mxu0 0.0
    %97 = vmatprep.subr.mxu0 0.0
    %98 = vmatpush2.msra.mxu0 0.0
    %99 = vmatprep.subr.mxu0 0.0
    %100 = vmatpush2.msra.mxu0 0.0
    %101 = vmatprep.subr.mxu0 0.0
    %102 = vmatpush2.msra.mxu0 0.0
    %103 = vmatprep.subr.mxu0 0.0
    %104 = vmatpush2.msra.mxu0 0.0
    %105 = vmatprep.subr.mxu0 0.0
    %106 = vmatpush2.msra.mxu0 0.0
    %107 = vmatprep.subr.mxu0 0.0
    %108 = vmatpush2.msra.mxu0 0.0
    %109 = vmatprep.subr.mxu0 0.0
    %110 = vmatpush2.msra.mxu0 0.0
    %111 = vmatprep.subr.mxu0 0.0
    %112 = vmatpush2.msra.mxu0 0.0
    %113 = vmatprep.subr.mxu0 0.0
    %114 = vmatpush2.msra.mxu0 0.0
    %115 = vmatprep.subr.mxu0 0.0
    %116 = vmatpush2.msra.mxu0 0.0
    %117 = vmatprep.subr.mxu0 0.0
    %118 = vmatpush2.msra.mxu0 0.0
    %119 = vmatprep.subr.mxu0 0.0
    %120 = vmatpush2.msra.mxu0 0.0
    %121 = vmatprep.mubr.f32.mxu0 0.0
    %122 = vmatmul.mubr.f32.gmra.mxu0 %v55
    %v123 = vpop.f32.mrf.mxu0
    %v124 = vadd.f32 %v51, %v123
    %v125 = vpop.f32.mrf.mxu0
    %126 = vdwg.mxu0
    %127 = vst.msk [vmem:[#allocation7] sm:$0xff] %vm53, %v124
    // Predicated region
    $region22: #{tpu_custom_call.1} parent=1 // pred_check
      _
    $region23: #{tpu_custom_call.1} parent=1 // pred_check_branch
      %129 = sbr.rel (0) target = $region25
    $region24: #{tpu_custom_call.1} parent=1 // pred_region
      %s131 = ssub.s32 128, 128
      %132 = vsyncadd [#allocation4], %s131
      %s134 = sshll.u32 [#allocation7], 4
      %s135 = int_to_ptr.vmem [resolvable:$true] %s134
      %137 = dma.vmem_to_hbm [thread:$0]  %s135, 128, %s3, [#allocation4]
    $region25: #{tpu_custom_call.1} parent=1 // pred_fallthru
      _
    // Predicated region
    $region26: #{tpu_custom_call.1} parent=1 // pred_check
      _
    $region27: #{tpu_custom_call.1} parent=1 // pred_check_branch
      %139 = sbr.rel (0) target = $region29
    $region28: #{tpu_custom_call.1} parent=1 // pred_region
      %140 = dma.done [#allocation4], 128
    $region29: #{tpu_custom_call.1} parent=1 // pred_fallthru
      _
    %141 = vsyncpa [#allocation3], 1
    %142 = vsyncpa [#allocation6], 1
    %143 = vsyncpa [#allocation4], 1

// kernel: tpu_custom_call.1
$region0: #{tpu_custom_call.1}
  #allocation0 [shape = 'u32[]', space=smem, size = 0x4, offset = 0x4, fixed_abs, tag = 'smem constant byte address 0x4 - core index']
  #allocation1 [shape = 'u32[144,128]{1,0:T(1,128)}', space=vmem, size = 0x12000, scoped, tag = 'internal scratch']
  %s0 = inlined_call_operand.hbm [shape: f32[8,32], index: 0, kind: input, shape index: {}]
  %s1 = inlined_call_operand.hbm [shape: f32[32,32], index: 1, kind: input, shape index: {}]
  %s2 = inlined_call_operand.vmem [shape: f32[1,32], index: 2, kind: input, shape index: {}]
  %s3 = inlined_call_operand.hbm [shape: f32[8,32], index: 3, kind: output, shape index: {}]
  %s4 = sld [smem:[#allocation0]]
  $region30: #{tpu_custom_call.1} parent=0
    _
  %s6 = ssub.s32 1, %s4
  %s7 = scalar_select 0, %s6, %s4
  $region1: #{tpu_custom_call.1} parent=0
    #allocation2 [shape = 'u8[4096]{0}', space=vmem, size = 0x1000, scoped, tag = 'input window, operand 0, single buffered']
    #allocation3 [shape = 's32[1]{0}', space=sflag, size = 0x4, scoped, tag = 'scoped memory for tpu_custom_call.1']
    #allocation4 [shape = 's32[1]{0}', space=sflag, size = 0x4, scoped, tag = 'scoped memory for tpu_custom_call.1']
    #allocation5 [shape = 'u8[16384]{0}', space=vmem, size = 0x4000, scoped, tag = 'input window, operand 1, single buffered']
    #allocation6 [shape = 's32[1]{0}', space=sflag, size = 0x4, scoped, tag = 'scoped memory for tpu_custom_call.1']
    #allocation7 [shape = 'u8[4096]{0}', space=vmem, size = 0x1000, scoped, tag = 'output window, operand 0, single buffered']
    %8 = vsyncpa [#allocation3], 0
    %9 = vsyncpa [#allocation6], 0
    %10 = vsyncpa [#allocation4], 0
    // Predicated region
    $region2: #{tpu_custom_call.1} parent=1 // pred_check
      _
    $region3: #{tpu_custom_call.1} parent=1 // pred_check_branch
      %12 = sbr.rel (0) target = $region5
    $region4: #{tpu_custom_call.1} parent=1 // pred_region
      %s14 = ssub.s32 128, 128
      %15 = vsyncadd [#allocation3], %s14
      %s17 = sshll.u32 [#allocation2], 4
      %s18 = int_to_ptr.vmem [resolvable:$true] %s17
      %20 = dma.hbm_to_vmem [thread:$0]  %s0, 128, %s18, [#allocation3]
    $region5: #{tpu_custom_call.1} parent=1 // pred_fallthru
      _
    // Predicated region
    $region6: #{tpu_custom_call.1} parent=1 // pred_check
      _
    $region7: #{tpu_custom_call.1} parent=1 // pred_check_branch
      %22 = sbr.rel (0) target = $region9
    $region8: #{tpu_custom_call.1} parent=1 // pred_region
      %s24 = ssub.s32 512, 512
      %25 = vsyncadd [#allocation6], %s24
      %s26 = sshll.u32 [#allocation5], 4
      %s27 = int_to_ptr.vmem [resolvable:$true] %s26
      %32 = dma.hbm_to_vmem [thread:$0]  %s1, 512, %s27, [#allocation6], 128, 128, 8
    $region9: #{tpu_custom_call.1} parent=1 // pred_fallthru
      _
    // Predicated region
    $region10: #{tpu_custom_call.1} parent=1 // pred_check
      _
    $region11: #{tpu_custom_call.1} parent=1 // pred_check_branch
      %34 = sbr.rel (0) target = $region13
    $region12: #{tpu_custom_call.1} parent=1 // pred_region
      _
    $region13: #{tpu_custom_call.1} parent=1 // pred_fallthru
      _
    // Predicated region
    $region14: #{tpu_custom_call.1} parent=1 // pred_check
      _
    $region15: #{tpu_custom_call.1} parent=1 // pred_check_branch
      %36 = sbr.rel (0) target = $region17
    $region16: #{tpu_custom_call.1} parent=1 // pred_region
      %37 = dma.done [#allocation3], 128
    $region17: #{tpu_custom_call.1} parent=1 // pred_fallthru
      _
    // Predicated region
    $region18: #{tpu_custom_call.1} parent=1 // pred_check
      _
    $region19: #{tpu_custom_call.1} parent=1 // pred_check_branch
      %39 = sbr.rel (0) target = $region21
    $region20: #{tpu_custom_call.1} parent=1 // pred_region
      %40 = dma.done [#allocation6], 512
    $region21: #{tpu_custom_call.1} parent=1 // pred_fallthru
      _
    %v41 = vld [vmem:[#allocation2] sm:$0xff]
    %v42 = vld [vmem:[#allocation5] sm:$0xff]
    %v43 = vld [vmem:[#allocation5 + $0x8] sm:$0xff]
    %v44 = vld [vmem:[#allocation5 + $0x10] sm:$0xff]
    %v45 = vld [vmem:[#allocation5 + $0x18] sm:$0xff]
    %v46 = vld [vmem:[%s2] sm:$0x1]
    %v48 = vlaneseq
    %v49 = vshrl.u32 %v48, 7
    %v50 = vsub.s32 0, %v49
    %v51 = vrot.slane %v46, %v50
    %vm53 = vcmask 261120
    %v55 = vsel %vm53, %v41, 0
    %57 = vmatprep.subr.mxu0 0.0
    %58 = vmatpush1.msra.mxu0 0.0
    %59 = vmatprep.subr.mxu0 0.0
    %60 = vmatpush1.msra.mxu0 0.0
    %61 = vmatprep.subr.mxu0 0.0
    %62 = vmatpush1.msra.mxu0 0.0
    %63 = vmatprep.subr.mxu0 0.0
    %64 = vmatpush1.msra.mxu0 0.0
    %65 = vmatprep.subr.mxu0 0.0
    %66 = vmatpush1.msra.mxu0 0.0
    %67 = vmatprep.subr.mxu0 0.0
    %68 = vmatpush1.msra.mxu0 0.0
    %69 = vmatprep.subr.mxu0 0.0
    %70 = vmatpush1.msra.mxu0 0.0
    %71 = vmatprep.subr.mxu0 0.0
    %72 = vmatpush1.msra.mxu0 0.0
    %73 = vmatprep.subr.mxu0 0.0
    %74 = vmatpush1.msra.mxu0 0.0
    %75 = vmatprep.subr.mxu0 0.0
    %76 = vmatpush1.msra.mxu0 0.0
    %77 = vmatprep.subr.mxu0 0.0
    %78 = vmatpush1.msra.mxu0 0.0
    %79 = vmatprep.subr.mxu0 0.0
    %80 = vmatpush1.msra.mxu0 0.0
    %81 = vmatprep.subr.mxu0 0.0
    %82 = vmatpush1.msra.mxu0 %v45
    %83 = vmatprep.subr.mxu0 0.0
    %84 = vmatpush1.msra.mxu0 %v44
    %85 = vmatprep.subr.mxu0 0.0
    %86 = vmatpush1.msra.mxu0 %v43
    %87 = vmatprep.subr.mxu0 0.0
    %88 = vmatpush1.msra.mxu0 %v42
    %89 = vmatprep.subr.mxu0 0.0
    %90 = vmatpush2.msra.mxu0 0.0
    %91 = vmatprep.subr.mxu0 0.0
    %92 = vmatpush2.msra.mxu0 0.0
    %93 = vmatprep.subr.mxu0 0.0
    %94 = vmatpush2.msra.mxu0 0.0
    %95 = vmatprep.subr.mxu0 0.0
    %96 = vmatpush2.msra.mxu0 0.0
    %97 = vmatprep.subr.mxu0 0.0
    %98 = vmatpush2.msra.mxu0 0.0
    %99 = vmatprep.subr.mxu0 0.0
    %100 = vmatpush2.msra.mxu0 0.0
    %101 = vmatprep.subr.mxu0 0.0
    %102 = vmatpush2.msra.mxu0 0.0
    %103 = vmatprep.subr.mxu0 0.0
    %104 = vmatpush2.msra.mxu0 0.0
    %105 = vmatprep.subr.mxu0 0.0
    %106 = vmatpush2.msra.mxu0 0.0
    %107 = vmatprep.subr.mxu0 0.0
    %108 = vmatpush2.msra.mxu0 0.0
    %109 = vmatprep.subr.mxu0 0.0
    %110 = vmatpush2.msra.mxu0 0.0
    %111 = vmatprep.subr.mxu0 0.0
    %112 = vmatpush2.msra.mxu0 0.0
    %113 = vmatprep.subr.mxu0 0.0
    %114 = vmatpush2.msra.mxu0 0.0
    %115 = vmatprep.subr.mxu0 0.0
    %116 = vmatpush2.msra.mxu0 0.0
    %117 = vmatprep.subr.mxu0 0.0
    %118 = vmatpush2.msra.mxu0 0.0
    %119 = vmatprep.subr.mxu0 0.0
    %120 = vmatpush2.msra.mxu0 0.0
    %121 = vmatprep.mubr.f32.mxu0 0.0
    %122 = vmatmul.mubr.f32.gmra.mxu0 %v55
    %v123 = vpop.f32.mrf.mxu0
    %v124 = vadd.f32 %v51, %v123
    %v125 = vpop.f32.mrf.mxu0
    %126 = vdwg.mxu0
    %127 = vst.msk [vmem:[#allocation7] sm:$0xff] %vm53, %v124
    // Predicated region
    $region22: #{tpu_custom_call.1} parent=1 // pred_check
      _
    $region23: #{tpu_custom_call.1} parent=1 // pred_check_branch
      %129 = sbr.rel (0) target = $region25
    $region24: #{tpu_custom_call.1} parent=1 // pred_region
      %s131 = ssub.s32 128, 128
      %132 = vsyncadd [#allocation4], %s131
      %s134 = sshll.u32 [#allocation7], 4
      %s135 = int_to_ptr.vmem [resolvable:$true] %s134
      %137 = dma.vmem_to_hbm [thread:$0]  %s135, 128, %s3, [#allocation4]
    $region25: #{tpu_custom_call.1} parent=1 // pred_fallthru
      _
    // Predicated region
    $region26: #{tpu_custom_call.1} parent=1 // pred_check
      _
    $region27: #{tpu_custom_call.1} parent=1 // pred_check_branch
      %139 = sbr.rel (0) target = $region29
    $region28: #{tpu_custom_call.1} parent=1 // pred_region
      %140 = dma.done [#allocation4], 128
    $region29: #{tpu_custom_call.1} parent=1 // pred_fallthru
      _
    %141 = vsyncpa [#allocation3], 1
    %142 = vsyncpa [#allocation6], 1
    %143 = vsyncpa [#allocation4], 1

</llo_original>
